<compile_context>
chip_gen: v7x
topology: tpu7x:2x2x1
jax: 0.10.0
libtpu: 0.0.40
codegen_flags: <defaults>
</compile_context>

<pallas_src>
import math

import jax
import jax.numpy as jnp
from jax.experimental import pallas as pl
from jax.experimental.pallas import tpu as pltpu

MIN_GAIN = -60.0
MAX_GAIN = 6.0
_LN10_OVER_20 = math.log(10.0) / 20.0


def _gain_kernel(x_ref, g_ref, o_ref):
    # g_ref: (tile_r, 1) normalized gain in [0, 1]
    g = g_ref[...]
    gain_db = MIN_GAIN + (MAX_GAIN - MIN_GAIN) * g             # from_0to1
    gain_lin = jnp.exp(gain_db * _LN10_OVER_20)                # 10**(db/20) via EUP exp
    o_ref[...] = gain_lin * x_ref[...]                         # broadcast over lanes


def _round_up(v: int, m: int) -> int:
    return ((v + m - 1) // m) * m


def _choose_tiles(rows: int, n: int, itemsize: int, *,
                  target_block_bytes: int,
                  max_tile_rows: int,
                  min_grid_steps: int = 4,
                  min_split_block_bytes: int = 512 << 10):
    """Tile selection for a (rows, n) streaming multiply.

    Priorities:
      1. Blocks big enough (~target_block_bytes) that the ~0.35 us/step grid
         overhead is hidden (mem-bound kernel -> bandwidth is the roofline).
      2. Row tile is the full row extent unless rows is large and divisible
         by 8 (the (8,128) BlockSpec constraint), keeping VMEM blocks bounded
         for big batches.
      3. When blocks stay >= ~512 KiB, keep at least `min_grid_steps` grid
         steps so v7x can split the "parallel" axes across its 2 TensorCores
         (neutral on v5e/v6e).
      4. Lane tile is always a multiple of 128 (vreg lane width).
    """
    if rows > max_tile_rows and rows % 8 == 0:
        tile_r = max(8, (min(max_tile_rows, rows) // 8) * 8)
    else:
        tile_r = rows

    n_pad = _round_up(n, 128)
    tn_big = max(128, (target_block_bytes // (tile_r * itemsize)) // 128 * 128)
    tn_big = min(tn_big, n_pad)

    if pl.cdiv(rows, tile_r) < min_grid_steps:
        tn_split = max(128, _round_up(pl.cdiv(n, min_grid_steps), 128))
        if tile_r * tn_split * itemsize >= min_split_block_bytes:
            return tile_r, min(tn_big, tn_split)
    return tile_r, tn_big


def _maybe_fold_sublanes(x: jax.Array, gain: jax.Array):
    """For B < 8, fold samples into the sublane axis (free contiguous reshape)
    so each (8,128) vreg is fully used instead of streaming (B, tn) blocks
    that occupy only B of 8 sublanes and produce masked partial stores."""
    B, N = x.shape
    if B >= 8:
        return x, gain, None
    k = 8 // B
    if k <= 1 or N % k != 0:
        return x, gain, None
    # Row-major reshape keeps each new row entirely inside one original row,
    # so the per-row gain just gets repeated k times.
    xf = x.reshape(B * k, N // k)
    gf = jnp.repeat(gain, k, axis=0)
    return xf, gf, (B, N)


def gain_forward(x: jax.Array, gain: jax.Array, *,
                 target_block_bytes: int = 1 << 20,
                 max_tile_rows: int = 512) -> jax.Array:
    """x: (B, N) float32 audio, gain: (B, 1) float32 normalized in [0, 1]."""
    B, N = x.shape
    assert gain.shape == (B, 1), gain.shape

    xf, gf, folded = _maybe_fold_sublanes(x, gain)
    rows, n = xf.shape
    itemsize = xf.dtype.itemsize

    tile_r, tile_n = _choose_tiles(rows, n, itemsize,
                                   target_block_bytes=target_block_bytes,
                                   max_tile_rows=max_tile_rows)
    grid = (pl.cdiv(rows, tile_r), pl.cdiv(n, tile_n))
    num_steps = grid[0] * grid[1]

    out = pl.pallas_call(
        _gain_kernel,
        out_shape=jax.ShapeDtypeStruct((rows, n), xf.dtype),
        grid_spec=pltpu.PrefetchScalarGridSpec(
            num_scalar_prefetch=0,
            grid=grid,
            in_specs=[
                pl.BlockSpec((tile_r, tile_n), lambda i, j: (i, j)),   # x tile
                pl.BlockSpec((tile_r, 1), lambda i, j: (i, 0)),        # gain (per row tile)
            ],
            out_specs=pl.BlockSpec((tile_r, tile_n), lambda i, j: (i, j)),
        ),
        compiler_params=pltpu.CompilerParams(
            dimension_semantics=("parallel", "parallel"),  # megacore sharding on v7x
            vmem_limit_bytes=32 << 20,                     # v5e default scoped VMEM is 16 MiB
        ),
        cost_estimate=pl.CostEstimate(
            flops=2 * rows * n,                                  # scale + multiply
            transcendentals=tile_r * num_steps,                  # one exp per row per step
            bytes_accessed=2 * rows * n * itemsize + rows * itemsize,
        ),
    )(xf, gf)

    if folded is not None:
        out = out.reshape(folded)
    return out


def gain_reference(x, gain):
    gain_db = MIN_GAIN + (MAX_GAIN - MIN_GAIN) * gain
    gain_lin = jnp.power(10.0, gain_db / 20.0)
    return gain_lin * x


if __name__ == "__main__":
    key = jax.random.PRNGKey(0)

    def check(B, N, **kwargs):
        kx, kg = jax.random.split(jax.random.fold_in(key, B * 100003 + N))
        x = jax.random.normal(kx, (B, N), dtype=jnp.float32)
        gain = jax.random.uniform(kg, (B, 1), dtype=jnp.float32)  # normalized 0..1
        out = jax.block_until_ready(gain_forward(x, gain, **kwargs))
        ref = gain_reference(x, gain)
        assert out.shape == (B, N) and out.dtype == jnp.float32, (out.shape, out.dtype)
        assert jnp.allclose(out, ref, rtol=1e-5, atol=1e-5), (B, N)

    check(8, 4096)                                        # single big block
    check(8, 4096, target_block_bytes=16 << 10)           # multi-step lane grid / pipelining
    check(8, 3000)                                        # N not a tile multiple -> masked last block
    check(1, 2048)                                        # B=1 folded to (8, 256): full sublanes
    check(3, 2048)                                        # B=3 folded to (6, 1024)
    check(16, 4096, target_block_bytes=16 << 10,
          max_tile_rows=8)                                # exercises 2-D (row, lane) grid

    print("KERNEL_OK")
</pallas_src>

<mosaic_0001>
module attributes {stable_mosaic.version = 11 : i64} {
  func.func @_gain_kernel(%arg0: i32, %arg1: i32, %arg2: memref<8x4096xf32, #tpu.memory_space<vmem>>, %arg3: memref<8x1xf32, #tpu.memory_space<vmem>>, %arg4: memref<8x4096xf32, #tpu.memory_space<vmem>>) attributes {dimension_semantics = [#tpu.dimension_semantics<parallel>, #tpu.dimension_semantics<parallel>], iteration_bounds = array<i64: 1, 1>, scalar_prefetch = 0 : i64, scratch_operands = 0 : i64, tpu.core_type = #tpu.core_type<tc>, window_params = [{transform_indices = @transform_0, window_bounds = array<i64: 8, 4096>}, {transform_indices = @transform_1, window_bounds = array<i64: 8, 1>}, {transform_indices = @transform_2, window_bounds = array<i64: 8, 4096>}]} {
    %c0 = arith.constant 0 : index
    %c0_0 = arith.constant 0 : index
    %0 = vector.load %arg3[%c0, %c0_0] : memref<8x1xf32, #tpu.memory_space<vmem>>, vector<8x1xf32>
    %cst = arith.constant 6.600000e+01 : f32
    %1 = vector.broadcast %cst : f32 to vector<8x1xf32>
    %2 = arith.mulf %1, %0 : vector<8x1xf32>
    %cst_1 = arith.constant -6.000000e+01 : f32
    %3 = vector.broadcast %cst_1 : f32 to vector<8x1xf32>
    %4 = arith.addf %3, %2 : vector<8x1xf32>
    %cst_2 = arith.constant 0.115129255 : f32
    %5 = vector.broadcast %cst_2 : f32 to vector<8x1xf32>
    %6 = arith.mulf %4, %5 : vector<8x1xf32>
    %7 = math.exp %6 : vector<8x1xf32>
    %c0_3 = arith.constant 0 : index
    %c0_4 = arith.constant 0 : index
    %8 = vector.load %arg2[%c0_3, %c0_4] : memref<8x4096xf32, #tpu.memory_space<vmem>>, vector<8x4096xf32>
    %9 = vector.broadcast %7 : vector<8x1xf32> to vector<8x4096xf32>
    %10 = arith.mulf %9, %8 : vector<8x4096xf32>
    %c0_5 = arith.constant 0 : index
    %c0_6 = arith.constant 0 : index
    %11 = vector.load %arg4[%c0_5, %c0_6] : memref<8x4096xf32, #tpu.memory_space<vmem>>, vector<8x4096xf32>
    tpu.vector_store %arg4[%c0_5, %c0_6], %10 {strides = array<i32>} : memref<8x4096xf32, #tpu.memory_space<vmem>>, vector<8x4096xf32>,
    return
  }
  func.func @transform_0(%arg0: i32, %arg1: i32) -> (i32, i32) {
    %c0_i32 = arith.constant 0 : i32
    return %arg0, %arg1 : i32, i32
  }
  func.func @transform_1(%arg0: i32, %arg1: i32) -> (i32, i32) {
    %c0_i32 = arith.constant 0 : i32
    %c0_i32_0 = arith.constant 0 : i32
    return %arg0, %c0_i32 : i32, i32
  }
  func.func @transform_2(%arg0: i32, %arg1: i32) -> (i32, i32) {
    %c0_i32 = arith.constant 0 : i32
    return %arg0, %arg1 : i32, i32
  }
}

</mosaic_0001>

<llo_original>
// kernel: tpu_custom_call.1
$region0: #{tpu_custom_call.1}
  #allocation0 [shape = 'u32[]', space=smem, size = 0x4, offset = 0x4, fixed_abs, tag = 'smem constant byte address 0x4 - core index']
  #allocation1 [shape = 'u32[144,128]{1,0:T(1,128)}', space=vmem, size = 0x12000, scoped, tag = 'internal scratch']
  %s0 = inlined_call_operand.hbm [shape: f32[8,4096], index: 0, kind: input, shape index: {}]
  %s1 = inlined_call_operand.vmem [shape: f32[8,1], index: 1, kind: input, shape index: {}]
  %s2 = inlined_call_operand.hbm [shape: f32[8,4096], index: 2, kind: output, shape index: {}]
  %s3 = sld [smem:[#allocation0]]
  $region22: #{tpu_custom_call.1} parent=0
    _
  %s5 = ssub.s32 1, %s3
  %s6 = scalar_select 0, %s5, %s3
  $region1: #{tpu_custom_call.1} parent=0
    #allocation2 [shape = 'u8[131072]{0}', space=vmem, size = 0x20000, scoped, tag = 'input window, operand 0, single buffered']
    #allocation3 [shape = 's32[1]{0}', space=sflag, size = 0x4, scoped, tag = 'scoped memory for tpu_custom_call.1']
    #allocation4 [shape = 's32[1]{0}', space=sflag, size = 0x4, scoped, tag = 'scoped memory for tpu_custom_call.1']
    #allocation5 [shape = 'u8[131072]{0}', space=vmem, size = 0x20000, scoped, tag = 'output window, operand 0, single buffered']
    %7 = vsyncpa [#allocation3], 0
    %8 = vsyncpa [#allocation4], 0
    // Predicated region
    $region2: #{tpu_custom_call.1} parent=1 // pred_check
      _
    $region3: #{tpu_custom_call.1} parent=1 // pred_check_branch
      %10 = sbr.rel (0) target = $region5
    $region4: #{tpu_custom_call.1} parent=1 // pred_region
      %s12 = ssub.s32 4096, 4096
      %13 = vsyncadd [#allocation3], %s12
      %s15 = sshll.u32 [#allocation2], 4
      %s16 = int_to_ptr.vmem [resolvable:$true] %s15
      %18 = dma.hbm_to_vmem [thread:$0]  %s0, 4096, %s16, [#allocation3]
    $region5: #{tpu_custom_call.1} parent=1 // pred_fallthru
      _
    // Predicated region
    $region6: #{tpu_custom_call.1} parent=1 // pred_check
      _
    $region7: #{tpu_custom_call.1} parent=1 // pred_check_branch
      %20 = sbr.rel (0) target = $region9
    $region8: #{tpu_custom_call.1} parent=1 // pred_region
      _
    $region9: #{tpu_custom_call.1} parent=1 // pred_fallthru
      _
    // Predicated region
    $region10: #{tpu_custom_call.1} parent=1 // pred_check
      _
    $region11: #{tpu_custom_call.1} parent=1 // pred_check_branch
      %22 = sbr.rel (0) target = $region13
    $region12: #{tpu_custom_call.1} parent=1 // pred_region
      %23 = dma.done [#allocation3], 4096
    $region13: #{tpu_custom_call.1} parent=1 // pred_fallthru
      _
    %v24 = vld [vmem:[%s1] sm:$0xff]
    %v25 = vmul.f32 %v24, 66.0
    %v26 = vadd.f32 %v25, -60.0
    %v27 = vmul.f32 %v26, 0.115129255
    %v28 = vmul.f32 %v27, 1.442695
    %v29 = vpow.pop %v28
    %v30 = vld [vmem:[#allocation2] sm:$0xff]
    %v31 = vld [vmem:[#allocation2 + $0x8] sm:$0xff]
    %v32 = vld [vmem:[#allocation2 + $0x10] sm:$0xff]
    %v33 = vld [vmem:[#allocation2 + $0x18] sm:$0xff]
    %v34 = vld [vmem:[#allocation2 + $0x20] sm:$0xff]
    %v35 = vld [vmem:[#allocation2 + $0x28] sm:$0xff]
    %v36 = vld [vmem:[#allocation2 + $0x30] sm:$0xff]
    %v37 = vld [vmem:[#allocation2 + $0x38] sm:$0xff]
    %v38 = vld [vmem:[#allocation2 + $0x40] sm:$0xff]
    %v39 = vld [vmem:[#allocation2 + $0x48] sm:$0xff]
    %v40 = vld [vmem:[#allocation2 + $0x50] sm:$0xff]
    %v41 = vld [vmem:[#allocation2 + $0x58] sm:$0xff]
    %v42 = vld [vmem:[#allocation2 + $0x60] sm:$0xff]
    %v43 = vld [vmem:[#allocation2 + $0x68] sm:$0xff]
    %v44 = vld [vmem:[#allocation2 + $0x70] sm:$0xff]
    %v45 = vld [vmem:[#allocation2 + $0x78] sm:$0xff]
    %v46 = vld [vmem:[#allocation2 + $0x80] sm:$0xff]
    %v47 = vld [vmem:[#allocation2 + $0x88] sm:$0xff]
    %v48 = vld [vmem:[#allocation2 + $0x90] sm:$0xff]
    %v49 = vld [vmem:[#allocation2 + $0x98] sm:$0xff]
    %v50 = vld [vmem:[#allocation2 + $0xa0] sm:$0xff]
    %v51 = vld [vmem:[#allocation2 + $0xa8] sm:$0xff]
    %v52 = vld [vmem:[#allocation2 + $0xb0] sm:$0xff]
    %v53 = vld [vmem:[#allocation2 + $0xb8] sm:$0xff]
    %v54 = vld [vmem:[#allocation2 + $0xc0] sm:$0xff]
    %v55 = vld [vmem:[#allocation2 + $0xc8] sm:$0xff]
    %v56 = vld [vmem:[#allocation2 + $0xd0] sm:$0xff]
    %v57 = vld [vmem:[#allocation2 + $0xd8] sm:$0xff]
    %v58 = vld [vmem:[#allocation2 + $0xe0] sm:$0xff]
    %v59 = vld [vmem:[#allocation2 + $0xe8] sm:$0xff]
    %v60 = vld [vmem:[#allocation2 + $0xf0] sm:$0xff]
    %v61 = vld [vmem:[#allocation2 + $0xf8] sm:$0xff]
    %63 = vset.pattern.permute.xlu0 0
    %64 = vperm.xlu0 %63, %v29
    %v65 = vpop.permute.xlu0 %64
    %v67 = vmul.f32 %v65, %v30
    %v68 = vmul.f32 %v65, %v31
    %v69 = vmul.f32 %v65, %v32
    %v70 = vmul.f32 %v65, %v33
    %v71 = vmul.f32 %v65, %v34
    %v72 = vmul.f32 %v65, %v35
    %v73 = vmul.f32 %v65, %v36
    %v74 = vmul.f32 %v65, %v37
    %v75 = vmul.f32 %v65, %v38
    %v76 = vmul.f32 %v65, %v39
    %v77 = vmul.f32 %v65, %v40
    %v78 = vmul.f32 %v65, %v41
    %v79 = vmul.f32 %v65, %v42
    %v80 = vmul.f32 %v65, %v43
    %v81 = vmul.f32 %v65, %v44
    %v82 = vmul.f32 %v65, %v45
    %v83 = vmul.f32 %v65, %v46
    %v84 = vmul.f32 %v65, %v47
    %v85 = vmul.f32 %v65, %v48
    %v86 = vmul.f32 %v65, %v49
    %v87 = vmul.f32 %v65, %v50
    %v88 = vmul.f32 %v65, %v51
    %v89 = vmul.f32 %v65, %v52
    %v90 = vmul.f32 %v65, %v53
    %v91 = vmul.f32 %v65, %v54
    %v92 = vmul.f32 %v65, %v55
    %v93 = vmul.f32 %v65, %v56
    %v94 = vmul.f32 %v65, %v57
    %v95 = vmul.f32 %v65, %v58
    %v96 = vmul.f32 %v65, %v59
    %v97 = vmul.f32 %v65, %v60
    %v98 = vmul.f32 %v65, %v61
    %99 = vst [vmem:[#allocation5] sm:$0xff] %v67
    %100 = vst [vmem:[#allocation5 + $0x8] sm:$0xff] %v68
    %101 = vst [vmem:[#allocation5 + $0x10] sm:$0xff] %v69
    %102 = vst [vmem:[#allocation5 + $0x18] sm:$0xff] %v70
    %103 = vst [vmem:[#allocation5 + $0x20] sm:$0xff] %v71
    %104 = vst [vmem:[#allocation5 + $0x28] sm:$0xff] %v72
    %105 = vst [vmem:[#allocation5 + $0x30] sm:$0xff] %v73
    %106 = vst [vmem:[#allocation5 + $0x38] sm:$0xff] %v74
    %107 = vst [vmem:[#allocation5 + $0x40] sm:$0xff] %v75
    %108 = vst [vmem:[#allocation5 + $0x48] sm:$0xff] %v76
    %109 = vst [vmem:[#allocation5 + $0x50] sm:$0xff] %v77
    %110 = vst [vmem:[#allocation5 + $0x58] sm:$0xff] %v78
    %111 = vst [vmem:[#allocation5 + $0x60] sm:$0xff] %v79
    %112 = vst [vmem:[#allocation5 + $0x68] sm:$0xff] %v80
    %113 = vst [vmem:[#allocation5 + $0x70] sm:$0xff] %v81
    %114 = vst [vmem:[#allocation5 + $0x78] sm:$0xff] %v82
    %115 = vst [vmem:[#allocation5 + $0x80] sm:$0xff] %v83
    %116 = vst [vmem:[#allocation5 + $0x88] sm:$0xff] %v84
    %117 = vst [vmem:[#allocation5 + $0x90] sm:$0xff] %v85
    %118 = vst [vmem:[#allocation5 + $0x98] sm:$0xff] %v86
    %119 = vst [vmem:[#allocation5 + $0xa0] sm:$0xff] %v87
    %120 = vst [vmem:[#allocation5 + $0xa8] sm:$0xff] %v88
    %121 = vst [vmem:[#allocation5 + $0xb0] sm:$0xff] %v89
    %122 = vst [vmem:[#allocation5 + $0xb8] sm:$0xff] %v90
    %123 = vst [vmem:[#allocation5 + $0xc0] sm:$0xff] %v91
    %124 = vst [vmem:[#allocation5 + $0xc8] sm:$0xff] %v92
    %125 = vst [vmem:[#allocation5 + $0xd0] sm:$0xff] %v93
    %126 = vst [vmem:[#allocation5 + $0xd8] sm:$0xff] %v94
    %127 = vst [vmem:[#allocation5 + $0xe0] sm:$0xff] %v95
    %128 = vst [vmem:[#allocation5 + $0xe8] sm:$0xff] %v96
    %129 = vst [vmem:[#allocation5 + $0xf0] sm:$0xff] %v97
    %130 = vst [vmem:[#allocation5 + $0xf8] sm:$0xff] %v98
    // Predicated region
    $region14: #{tpu_custom_call.1} parent=1 // pred_check
      _
    $region15: #{tpu_custom_call.1} parent=1 // pred_check_branch
      %132 = sbr.rel (0) target = $region17
    $region16: #{tpu_custom_call.1} parent=1 // pred_region
      %s134 = ssub.s32 4096, 4096
      %135 = vsyncadd [#allocation4], %s134
      %s137 = sshll.u32 [#allocation5], 4
      %s138 = int_to_ptr.vmem [resolvable:$true] %s137
      %140 = dma.vmem_to_hbm [thread:$0]  %s138, 4096, %s2, [#allocation4]
    $region17: #{tpu_custom_call.1} parent=1 // pred_fallthru
      _
    // Predicated region
    $region18: #{tpu_custom_call.1} parent=1 // pred_check
      _
    $region19: #{tpu_custom_call.1} parent=1 // pred_check_branch
      %142 = sbr.rel (0) target = $region21
    $region20: #{tpu_custom_call.1} parent=1 // pred_region
      %143 = dma.done [#allocation4], 4096
    $region21: #{tpu_custom_call.1} parent=1 // pred_fallthru
      _
    %144 = vsyncpa [#allocation3], 1
    %145 = vsyncpa [#allocation4], 1

</llo_original>
